<compile_context>
chip_gen: v5e
topology: v5e:2x2
jax: 0.10.0
libtpu: 0.0.40
codegen_flags: <defaults>
</compile_context>

<pallas_src>
from functools import partial

import jax
import jax.numpy as jnp
from jax.experimental import pallas as pl
from jax.experimental.pallas import tpu as pltpu


def _round_up(n, m):
    return ((n + m - 1) // m) * m


def _nbytes(a):
    return int(a.size) * a.dtype.itemsize


def _vmem_budget_bytes():
    """Hardware VMEM capacity minus ~8 MiB headroom (conservative 64 MiB fallback)."""
    cap = 64 << 20
    try:
        info = pltpu.get_tpu_info()
        cap = int(getattr(info, "vmem_capacity_bytes", cap))
    except Exception:
        pass
    return max(cap - (8 << 20), 16 << 20)


# ---------------------------------------------------------------------------
# Kernels
# ---------------------------------------------------------------------------

def mlp_resident_kernel(x_ref, wi_ref, bi_ref, wh_ref, bh_ref, wo_ref, bo_ref, o_ref,
                        *, n_layers, residue, unroll):
    """Fused MLP forward, all arrays resident in VMEM, single grid=() invocation."""
    w_dt = wi_ref.dtype  # matmul input dtype (f32 or bf16); accumulation is always f32

    x = x_ref[...]                                                        # (Bp, Ip)

    # input layer + relu (bias/relu in f32)
    h = jnp.dot(x, wi_ref[...], preferred_element_type=jnp.float32) + bi_ref[...]
    h = jnp.maximum(h, 0.0)                                               # (Bp, Hp) f32

    # hidden layers
    def layer(i, h):
        y = jnp.dot(h.astype(w_dt), wh_ref[i],
                    preferred_element_type=jnp.float32) + bh_ref[i]
        y = jnp.maximum(y, 0.0)
        return y + h if residue else y

    if n_layers > 0:
        h = jax.lax.fori_loop(0, n_layers, layer, h, unroll=unroll)

    # output layer (no activation); lane-dense store
    o_ref[...] = (jnp.dot(h.astype(w_dt), wo_ref[...],
                          preferred_element_type=jnp.float32)
                  + bo_ref[...]).astype(o_ref.dtype)


def mlp_stream_kernel(x_ref, wi_ref, bi_ref, wh_ref, bh_ref, wo_ref, bo_ref, o_ref,
                      h_ref, *, residue):
    """Layer-streamed MLP: grid=(batch_tiles, n_layers); wh/bh are per-layer blocks,
    the activation is carried across layer steps in the h_ref VMEM scratch."""
    l = pl.program_id(1)
    n_layers = pl.num_programs(1)
    w_dt = wi_ref.dtype

    # input layer + relu on the first layer step of this batch tile
    @pl.when(l == 0)
    def _():
        h0 = jnp.dot(x_ref[...], wi_ref[...],
                     preferred_element_type=jnp.float32) + bi_ref[...]
        h_ref[...] = jnp.maximum(h0, 0.0)

    # hidden layer l (weights for this layer streamed/double-buffered by Pallas)
    h = h_ref[...]
    y = jnp.dot(h.astype(w_dt), wh_ref[0],
                preferred_element_type=jnp.float32) + bh_ref[0]
    y = jnp.maximum(y, 0.0)
    h_ref[...] = y + h if residue else y

    # output layer on the last layer step; lane-dense store
    @pl.when(l == n_layers - 1)
    def _():
        o_ref[...] = (jnp.dot(h_ref[...].astype(w_dt), wo_ref[...],
                              preferred_element_type=jnp.float32)
                      + bo_ref[...]).astype(o_ref.dtype)


# ---------------------------------------------------------------------------
# Host-side wrappers
# ---------------------------------------------------------------------------

def prepare_mlp_params(params, *, use_bf16=False):
    """Pad / cast the weights once (hoisted out of the per-call path).

    PyTorch nn.Linear stores (out, in); `params` here already holds (in, out)
    weights.  Feature dims are padded to multiples of 128 with exact zeros.
    """
    wi, bi, wh, bh, wo, bo = params
    n_layers = int(wh.shape[0])
    in_dim, h_dim = wi.shape
    out_dim = wo.shape[1]

    ip = _round_up(in_dim, 128)
    hp = _round_up(h_dim, 128)
    op = _round_up(out_dim, 128)
    # TODO(synk): on v6e/v7x with large dims, padding hp/op to 256 better matches the
    #             2x256x256 MXU; kept at 128 here since the test dims are tiny.

    def pad2(a, r, c):
        return jnp.pad(a, ((0, r - a.shape[0]), (0, c - a.shape[1])))

    def pad3(a, r, c):
        return jnp.pad(a, ((0, 0), (0, r - a.shape[1]), (0, c - a.shape[2])))

    wip = pad2(wi.astype(jnp.float32), ip, hp)
    bip = pad2(bi.astype(jnp.float32), 1, hp)          # padded bias lanes exactly zero
    if n_layers > 0:
        whp = pad3(wh.astype(jnp.float32), hp, hp)
        bhp = pad3(bh.astype(jnp.float32), 1, hp)
    else:
        whp = jnp.zeros((1, hp, hp), jnp.float32)      # placeholder, never used
        bhp = jnp.zeros((1, 1, hp), jnp.float32)
    wop = pad2(wo.astype(jnp.float32), hp, op)
    bop = pad2(bo.astype(jnp.float32), 1, op)

    if use_bf16:
        # bf16 matmul inputs, f32 accumulation; biases / elementwise stay f32.
        wip, whp, wop = (a.astype(jnp.bfloat16) for a in (wip, whp, wop))

    return dict(weights=(wip, bip, whp, bhp, wop, bop),
                n_layers=n_layers, in_dim=in_dim, h_dim=h_dim, out_dim=out_dim,
                ip=ip, hp=hp, op=op, use_bf16=use_bf16)


def multilayer_nn_forward(x, prepared, *, residue=True, force_stream=None):
    """Run the forward pass.  `prepared` comes from prepare_mlp_params (cached)."""
    wip, bip, whp, bhp, wop, bop = prepared["weights"]
    n_layers = prepared["n_layers"]
    in_dim, out_dim = prepared["in_dim"], prepared["out_dim"]
    ip, hp, op = prepared["ip"], prepared["hp"], prepared["op"]
    use_bf16 = prepared["use_bf16"]

    batch, x_in = x.shape
    assert x_in == in_dim, "input feature dim mismatch"

    sub = 16 if use_bf16 else 8        # bf16 packs 2 rows/sublane -> min tile (16,128)
    bp = _round_up(batch, sub)
    x_dt = jnp.bfloat16 if use_bf16 else jnp.float32

    budget = _vmem_budget_bytes()
    resident_bytes = (sum(_nbytes(a) for a in prepared["weights"])
                      + bp * ip * (2 if use_bf16 else 4)   # x tile
                      + bp * op * 4                        # out tile
                      + 2 * bp * hp * 4)                   # activation live values
    if force_stream is None:
        use_stream = (n_layers >= 1) and (resident_bytes > budget // 2)
    else:
        use_stream = bool(force_stream) and n_layers >= 1

    # ------------------------------------------------------------------ resident
    if not use_stream:
        xp = jnp.pad(x.astype(x_dt), ((0, bp - batch), (0, ip - in_dim)))
        kernel = partial(mlp_resident_kernel, n_layers=n_layers, residue=residue,
                         unroll=(n_layers <= 8 and hp <= 512))
        vmem_spec = pl.BlockSpec(memory_space=pltpu.MemorySpace.VMEM)
        out_padded = pl.pallas_call(
            kernel,
            out_shape=jax.ShapeDtypeStruct((bp, op), jnp.float32),
            in_specs=[vmem_spec] * 7,
            out_specs=vmem_spec,
            compiler_params=pltpu.CompilerParams(vmem_limit_bytes=int(budget)),
        )(xp, wip, bip, whp, bhp, wop, bop)
        return out_padded[:batch, :out_dim]

    # ------------------------------------------------------------------ streamed
    # Batch tile: single tile for small batches; 256 rows for large ones (so the
    # "parallel" axis can shard across v7x's two TensorCores without per-step overhead
    # dominating tiny shapes).
    tb = bp if bp <= 512 else 256
    bp = _round_up(bp, tb)
    xp = jnp.pad(x.astype(x_dt), ((0, bp - batch), (0, ip - in_dim)))

    kernel = partial(mlp_stream_kernel, residue=residue)
    grid = (bp // tb, n_layers)

    out_padded = pl.pallas_call(
        kernel,
        out_shape=jax.ShapeDtypeStruct((bp, op), jnp.float32),
        grid_spec=pltpu.PrefetchScalarGridSpec(
            num_scalar_prefetch=0,
            grid=grid,
            in_specs=[
                pl.BlockSpec((tb, ip), lambda b, l: (b, 0)),         # x  (per batch tile)
                pl.BlockSpec((ip, hp), lambda b, l: (0, 0)),         # wi (resident)
                pl.BlockSpec((1, hp), lambda b, l: (0, 0)),          # bi (resident)
                pl.BlockSpec((1, hp, hp), lambda b, l: (l, 0, 0)),   # wh layer l (streamed)
                pl.BlockSpec((1, 1, hp), lambda b, l: (l, 0, 0)),    # bh layer l (streamed)
                pl.BlockSpec((hp, op), lambda b, l: (0, 0)),         # wo (resident)
                pl.BlockSpec((1, op), lambda b, l: (0, 0)),          # bo (resident)
            ],
            out_specs=pl.BlockSpec((tb, op), lambda b, l: (b, 0)),
            scratch_shapes=[pltpu.VMEM((tb, hp), jnp.float32)],      # activation carry
        ),
        compiler_params=pltpu.CompilerParams(
            vmem_limit_bytes=int(budget),
            dimension_semantics=("parallel", "arbitrary")),
    )(xp, wip, bip, whp, bhp, wop, bop)
    return out_padded[:batch, :out_dim]


# ---------------------------------------------------------------------------
# Test scaffolding
# ---------------------------------------------------------------------------

def init_params(key, input_dim, h_dim, output_dim, n_layers):
    """Deterministic synthetic parameters; weights already transposed to (in, out)."""
    ks = jax.random.split(key, 6)
    scale = 0.1
    wi = scale * jax.random.normal(ks[0], (input_dim, h_dim), jnp.float32)
    bi = scale * jax.random.normal(ks[1], (1, h_dim), jnp.float32)
    wh = scale * jax.random.normal(ks[2], (n_layers, h_dim, h_dim), jnp.float32)
    bh = scale * jax.random.normal(ks[3], (n_layers, 1, h_dim), jnp.float32)
    wo = scale * jax.random.normal(ks[4], (h_dim, output_dim), jnp.float32)
    bo = scale * jax.random.normal(ks[5], (1, output_dim), jnp.float32)
    return wi, bi, wh, bh, wo, bo


def reference_forward(x, params, *, residue=True):
    """Pure-JAX reference matching the PyTorch forward (for sanity check)."""
    wi, bi, wh, bh, wo, bo = params
    h = jnp.maximum(x @ wi + bi, 0.0)
    for i in range(wh.shape[0]):
        y = jnp.maximum(h @ wh[i] + bh[i], 0.0)
        h = y + h if residue else y
    return h @ wo + bo


if __name__ == "__main__":
    batch = 8
    input_dim = 16
    h_dim = 32
    output_dim = 4
    n_layers = 3

    key = jax.random.PRNGKey(0)
    kx, kp = jax.random.split(key)
    x = jax.random.normal(kx, (batch, input_dim), jnp.float32)
    params = init_params(kp, input_dim, h_dim, output_dim, n_layers)

    # Padding / casting hoisted out of the per-call path (done once, cached).
    prepared_f32 = prepare_mlp_params(params, use_bf16=False)
    prepared_bf16 = prepare_mlp_params(params, use_bf16=True)

    ok = True
    for residue in (True, False):
        ref = reference_forward(x, params, residue=residue)
        for force_stream in (False, True):   # exercise both resident & streamed paths
            out = jax.block_until_ready(
                multilayer_nn_forward(x, prepared_f32, residue=residue,
                                      force_stream=force_stream))
            assert out.shape == (batch, output_dim)
            if not jnp.allclose(out, ref, atol=1e-5, rtol=1e-5):
                ok = False

    # bf16 weight/activation path (f32 accumulation); looser tolerance.
    ref = reference_forward(x, params, residue=True)
    for force_stream in (False, True):
        out_bf16 = jax.block_until_ready(
            multilayer_nn_forward(x, prepared_bf16, residue=True,
                                  force_stream=force_stream))
        if not jnp.allclose(out_bf16, ref, atol=5e-2, rtol=5e-2):
            ok = False

    assert ok, "mismatch vs reference"
    print("KERNEL_OK")
</pallas_src>

<mosaic_0001>
module attributes {stable_mosaic.version = 11 : i64} {
  func.func @mlp_resident_kernel(%arg0: memref<8x128xf32, #tpu.memory_space<vmem>>, %arg1: memref<128x128xf32, #tpu.memory_space<vmem>>, %arg2: memref<1x128xf32, #tpu.memory_space<vmem>>, %arg3: memref<3x128x128xf32, #tpu.memory_space<vmem>>, %arg4: memref<3x1x128xf32, #tpu.memory_space<vmem>>, %arg5: memref<128x128xf32, #tpu.memory_space<vmem>>, %arg6: memref<1x128xf32, #tpu.memory_space<vmem>>, %arg7: memref<8x128xf32, #tpu.memory_space<vmem>>) attributes {dimension_semantics = [], scalar_prefetch = 0 : i64, scratch_operands = 0 : i64, tpu.core_type = #tpu.core_type<tc>} {
    %c0 = arith.constant 0 : index
    %c0_0 = arith.constant 0 : index
    %0 = vector.load %arg0[%c0, %c0_0] : memref<8x128xf32, #tpu.memory_space<vmem>>, vector<8x128xf32>
    %c0_1 = arith.constant 0 : index
    %c0_2 = arith.constant 0 : index
    %1 = vector.load %arg1[%c0_1, %c0_2] : memref<128x128xf32, #tpu.memory_space<vmem>>, vector<128x128xf32>
    %cst = arith.constant dense<0.000000e+00> : vector<8x128xf32>
    %2 = tpu.matmul %0, %1, %cst {dimension_numbers = #tpu.dot_dimension_numbers<[1], [0], [0], [1], [0, 0, 1, 1], [], []>} : vector<8x128xf32>, vector<128x128xf32>, vector<8x128xf32> -> vector<8x128xf32>
    %c0_3 = arith.constant 0 : index
    %c0_4 = arith.constant 0 : index
    %3 = vector.load %arg2[%c0_3, %c0_4] : memref<1x128xf32, #tpu.memory_space<vmem>>, vector<1x128xf32>
    %4 = vector.broadcast %3 : vector<1x128xf32> to vector<8x128xf32>
    %5 = arith.addf %2, %4 : vector<8x128xf32>
    %cst_5 = arith.constant 0.000000e+00 : f32
    %6 = vector.broadcast %cst_5 : f32 to vector<8x128xf32>
    %7 = arith.maximumf %5, %6 : vector<8x128xf32>
    %c0_i32 = arith.constant 0 : i32
    %8 = arith.index_cast %c0_i32 : i32 to index
    %c0_6 = arith.constant 0 : index
    %c0_7 = arith.constant 0 : index
    %9 = vector.load %arg3[%8, %c0_6, %c0_7] : memref<3x128x128xf32, #tpu.memory_space<vmem>>, vector<1x128x128xf32>
    %10 = vector.shape_cast %9 : vector<1x128x128xf32> to vector<128x128xf32>
    %cst_8 = arith.constant dense<0.000000e+00> : vector<8x128xf32>
    %11 = tpu.matmul %7, %10, %cst_8 {dimension_numbers = #tpu.dot_dimension_numbers<[1], [0], [0], [1], [0, 0, 1, 1], [], []>} : vector<8x128xf32>, vector<128x128xf32>, vector<8x128xf32> -> vector<8x128xf32>
    %12 = arith.index_cast %c0_i32 : i32 to index
    %c0_9 = arith.constant 0 : index
    %c0_10 = arith.constant 0 : index
    %13 = vector.load %arg4[%12, %c0_9, %c0_10] : memref<3x1x128xf32, #tpu.memory_space<vmem>>, vector<1x1x128xf32>
    %14 = vector.shape_cast %13 : vector<1x1x128xf32> to vector<1x128xf32>
    %15 = vector.broadcast %14 : vector<1x128xf32> to vector<8x128xf32>
    %16 = arith.addf %11, %15 : vector<8x128xf32>
    %cst_11 = arith.constant 0.000000e+00 : f32
    %17 = vector.broadcast %cst_11 : f32 to vector<8x128xf32>
    %18 = arith.maximumf %16, %17 : vector<8x128xf32>
    %19 = arith.addf %18, %7 : vector<8x128xf32>
    %c1_i32 = arith.constant 1 : i32
    %20 = arith.index_cast %c1_i32 : i32 to index
    %c0_12 = arith.constant 0 : index
    %c0_13 = arith.constant 0 : index
    %21 = vector.load %arg3[%20, %c0_12, %c0_13] : memref<3x128x128xf32, #tpu.memory_space<vmem>>, vector<1x128x128xf32>
    %22 = vector.shape_cast %21 : vector<1x128x128xf32> to vector<128x128xf32>
    %cst_14 = arith.constant dense<0.000000e+00> : vector<8x128xf32>
    %23 = tpu.matmul %19, %22, %cst_14 {dimension_numbers = #tpu.dot_dimension_numbers<[1], [0], [0], [1], [0, 0, 1, 1], [], []>} : vector<8x128xf32>, vector<128x128xf32>, vector<8x128xf32> -> vector<8x128xf32>
    %24 = arith.index_cast %c1_i32 : i32 to index
    %c0_15 = arith.constant 0 : index
    %c0_16 = arith.constant 0 : index
    %25 = vector.load %arg4[%24, %c0_15, %c0_16] : memref<3x1x128xf32, #tpu.memory_space<vmem>>, vector<1x1x128xf32>
    %26 = vector.shape_cast %25 : vector<1x1x128xf32> to vector<1x128xf32>
    %27 = vector.broadcast %26 : vector<1x128xf32> to vector<8x128xf32>
    %28 = arith.addf %23, %27 : vector<8x128xf32>
    %cst_17 = arith.constant 0.000000e+00 : f32
    %29 = vector.broadcast %cst_17 : f32 to vector<8x128xf32>
    %30 = arith.maximumf %28, %29 : vector<8x128xf32>
    %31 = arith.addf %30, %19 : vector<8x128xf32>
    %c2_i32 = arith.constant 2 : i32
    %32 = arith.index_cast %c2_i32 : i32 to index
    %c0_18 = arith.constant 0 : index
    %c0_19 = arith.constant 0 : index
    %33 = vector.load %arg3[%32, %c0_18, %c0_19] : memref<3x128x128xf32, #tpu.memory_space<vmem>>, vector<1x128x128xf32>
    %34 = vector.shape_cast %33 : vector<1x128x128xf32> to vector<128x128xf32>
    %cst_20 = arith.constant dense<0.000000e+00> : vector<8x128xf32>
    %35 = tpu.matmul %31, %34, %cst_20 {dimension_numbers = #tpu.dot_dimension_numbers<[1], [0], [0], [1], [0, 0, 1, 1], [], []>} : vector<8x128xf32>, vector<128x128xf32>, vector<8x128xf32> -> vector<8x128xf32>
    %36 = arith.index_cast %c2_i32 : i32 to index
    %c0_21 = arith.constant 0 : index
    %c0_22 = arith.constant 0 : index
    %37 = vector.load %arg4[%36, %c0_21, %c0_22] : memref<3x1x128xf32, #tpu.memory_space<vmem>>, vector<1x1x128xf32>
    %38 = vector.shape_cast %37 : vector<1x1x128xf32> to vector<1x128xf32>
    %39 = vector.broadcast %38 : vector<1x128xf32> to vector<8x128xf32>
    %40 = arith.addf %35, %39 : vector<8x128xf32>
    %cst_23 = arith.constant 0.000000e+00 : f32
    %41 = vector.broadcast %cst_23 : f32 to vector<8x128xf32>
    %42 = arith.maximumf %40, %41 : vector<8x128xf32>
    %43 = arith.addf %42, %31 : vector<8x128xf32>
    %c3_i32 = arith.constant 3 : i32
    %c0_24 = arith.constant 0 : index
    %c0_25 = arith.constant 0 : index
    %44 = vector.load %arg5[%c0_24, %c0_25] : memref<128x128xf32, #tpu.memory_space<vmem>>, vector<128x128xf32>
    %cst_26 = arith.constant dense<0.000000e+00> : vector<8x128xf32>
    %45 = tpu.matmul %43, %44, %cst_26 {dimension_numbers = #tpu.dot_dimension_numbers<[1], [0], [0], [1], [0, 0, 1, 1], [], []>} : vector<8x128xf32>, vector<128x128xf32>, vector<8x128xf32> -> vector<8x128xf32>
    %c0_27 = arith.constant 0 : index
    %c0_28 = arith.constant 0 : index
    %46 = vector.load %arg6[%c0_27, %c0_28] : memref<1x128xf32, #tpu.memory_space<vmem>>, vector<1x128xf32>
    %47 = vector.broadcast %46 : vector<1x128xf32> to vector<8x128xf32>
    %48 = arith.addf %45, %47 : vector<8x128xf32>
    %c0_29 = arith.constant 0 : index
    %c0_30 = arith.constant 0 : index
    %49 = vector.load %arg7[%c0_29, %c0_30] : memref<8x128xf32, #tpu.memory_space<vmem>>, vector<8x128xf32>
    tpu.vector_store %arg7[%c0_29, %c0_30], %48 {strides = array<i32>} : memref<8x128xf32, #tpu.memory_space<vmem>>, vector<8x128xf32>,
    return
  }
}

</mosaic_0001>

<llo_original>
// kernel: tpu_custom_call.1
$region0: #{tpu_custom_call.1}
  #allocation0 [shape = 'u32[]', space=smem, size = 0x4, offset = 0x4, fixed_abs, tag = 'smem constant byte address 0x4 - core index']
  #allocation1 [shape = 'u32[72,128]{1,0:T(1,128)}', space=vmem, size = 0x9000, scoped, tag = 'internal scratch']
  %s0 = inlined_call_operand.hbm [shape: f32[8,128], index: 0, kind: input, shape index: {}]
  %s1 = inlined_call_operand.hbm [shape: f32[128,128], index: 1, kind: input, shape index: {}]
  %s2 = inlined_call_operand.hbm [shape: f32[1,128], index: 2, kind: input, shape index: {}]
  %s3 = inlined_call_operand.hbm [shape: f32[3,128,128], index: 3, kind: input, shape index: {}]
  %s4 = inlined_call_operand.vmem [shape: f32[3,1,128], index: 4, kind: input, shape index: {}]
  %s5 = inlined_call_operand.hbm [shape: f32[128,128], index: 5, kind: input, shape index: {}]
  %s6 = inlined_call_operand.vmem [shape: f32[1,128], index: 6, kind: input, shape index: {}]
  %s7 = inlined_call_operand.hbm [shape: f32[8,128], index: 7, kind: output, shape index: {}]
  %s8 = sld [smem:[#allocation0]]
  $region58: #{tpu_custom_call.1} parent=0
    _
  %s10 = ssub.s32 1, %s8
  %s11 = scalar_select 0, %s10, %s8
  $region1: #{tpu_custom_call.1} parent=0
    #allocation2 [shape = 'u8[4096]{0}', space=vmem, size = 0x1000, scoped, tag = 'input window, operand 0, single buffered']
    #allocation3 [shape = 's32[1]{0}', space=sflag, size = 0x4, scoped, tag = 'scoped memory for tpu_custom_call.1']
    #allocation4 [shape = 's32[1]{0}', space=sflag, size = 0x4, scoped, tag = 'scoped memory for tpu_custom_call.1']
    #allocation5 [shape = 'u8[65536]{0}', space=vmem, size = 0x10000, scoped, tag = 'input window, operand 1, single buffered']
    #allocation6 [shape = 's32[1]{0}', space=sflag, size = 0x4, scoped, tag = 'scoped memory for tpu_custom_call.1']
    #allocation7 [shape = 'u8[512]{0}', space=vmem, size = 0x400, scoped, tag = 'input window, operand 2, single buffered']
    #allocation8 [shape = 'u8[196608]{0}', space=vmem, size = 0x30000, scoped, tag = 'input window, operand 3, single buffered']
    #allocation9 [shape = 's32[1]{0}', space=sflag, size = 0x4, scoped, tag = 'scoped memory for tpu_custom_call.1']
    #allocation10 [shape = 'u8[65536]{0}', space=vmem, size = 0x10000, scoped, tag = 'input window, operand 5, single buffered']
    #allocation11 [shape = 'u8[4096]{0}', space=vmem, size = 0x1000, scoped, tag = 'output window, operand 0, single buffered']
    %12 = vsyncpa [#allocation3], 0
    %13 = vsyncpa [#allocation6], 0
    %14 = vsyncpa [#allocation9], 0
    %15 = vsyncpa [#allocation4], 0
    // Predicated region
    $region2: #{tpu_custom_call.1} parent=1 // pred_check
      _
    $region3: #{tpu_custom_call.1} parent=1 // pred_check_branch
      %17 = sbr.rel (0) target = $region5
    $region4: #{tpu_custom_call.1} parent=1 // pred_region
      %19 = vsyncadd [#allocation3], 0
      %s21 = sshll.u32 %s0, 4
      %s22 = int_to_ptr.hbm [resolvable:$true] %s21
      %s23 = sshll.u32 [#allocation2], 4
      %s24 = int_to_ptr.vmem [resolvable:$true] %s23
      %26 = dma.hbm_to_vmem [thread:$0]  %s22, 128, %s24, [#allocation3]
    $region5: #{tpu_custom_call.1} parent=1 // pred_fallthru
      _
    // Predicated region
    $region6: #{tpu_custom_call.1} parent=1 // pred_check
      _
    $region7: #{tpu_custom_call.1} parent=1 // pred_check_branch
      %28 = sbr.rel (0) target = $region9
    $region8: #{tpu_custom_call.1} parent=1 // pred_region
      %30 = vsyncadd [#allocation6], 0
      %s31 = sshll.u32 %s1, 4
      %s32 = int_to_ptr.hbm [resolvable:$true] %s31
      %s33 = sshll.u32 [#allocation5], 4
      %s34 = int_to_ptr.vmem [resolvable:$true] %s33
      %39 = dma.hbm_to_vmem [thread:$0]  %s32, 2048, %s34, [#allocation6], 128, 128, 8
    $region9: #{tpu_custom_call.1} parent=1 // pred_fallthru
      _
    // Predicated region
    $region10: #{tpu_custom_call.1} parent=1 // pred_check
      _
    $region11: #{tpu_custom_call.1} parent=1 // pred_check_branch
      %41 = sbr.rel (0) target = $region13
    $region12: #{tpu_custom_call.1} parent=1 // pred_region
      %43 = vsyncadd [#allocation6], 0
      %s45 = sshll.u32 %s2, 4
      %s46 = int_to_ptr.hbm [resolvable:$true] %s45
      %s47 = sshll.u32 [#allocation7], 4
      %s48 = int_to_ptr.vmem [resolvable:$true] %s47
      %50 = dma.hbm_to_vmem [thread:$0]  %s46, 16, %s48, [#allocation6]
    $region13: #{tpu_custom_call.1} parent=1 // pred_fallthru
      _
    // Predicated region
    $region14: #{tpu_custom_call.1} parent=1 // pred_check
      _
    $region15: #{tpu_custom_call.1} parent=1 // pred_check_branch
      %52 = sbr.rel (0) target = $region17
    $region16: #{tpu_custom_call.1} parent=1 // pred_region
      %54 = vsyncadd [#allocation9], 0
      %s55 = sshll.u32 %s3, 4
      %s56 = int_to_ptr.hbm [resolvable:$true] %s55
      %s57 = sshll.u32 [#allocation8], 4
      %s58 = int_to_ptr.vmem [resolvable:$true] %s57
      %63 = dma.hbm_to_vmem [thread:$0]  %s56, 6144, %s58, [#allocation9], 128, 128, 8
    $region17: #{tpu_custom_call.1} parent=1 // pred_fallthru
      _
    // Predicated region
    $region18: #{tpu_custom_call.1} parent=1 // pred_check
      _
    $region19: #{tpu_custom_call.1} parent=1 // pred_check_branch
      %65 = sbr.rel (0) target = $region21
    $region20: #{tpu_custom_call.1} parent=1 // pred_region
      _
    $region21: #{tpu_custom_call.1} parent=1 // pred_fallthru
      _
    // Predicated region
    $region22: #{tpu_custom_call.1} parent=1 // pred_check
      _
    $region23: #{tpu_custom_call.1} parent=1 // pred_check_branch
      %67 = sbr.rel (0) target = $region25
    $region24: #{tpu_custom_call.1} parent=1 // pred_region
      %69 = vsyncadd [#allocation9], 0
      %s70 = sshll.u32 %s5, 4
      %s71 = int_to_ptr.hbm [resolvable:$true] %s70
      %s72 = sshll.u32 [#allocation10], 4
      %s73 = int_to_ptr.vmem [resolvable:$true] %s72
      %78 = dma.hbm_to_vmem [thread:$0]  %s71, 2048, %s73, [#allocation9], 128, 128, 8
    $region25: #{tpu_custom_call.1} parent=1 // pred_fallthru
      _
    // Predicated region
    $region26: #{tpu_custom_call.1} parent=1 // pred_check
      _
    $region27: #{tpu_custom_call.1} parent=1 // pred_check_branch
      %80 = sbr.rel (0) target = $region29
    $region28: #{tpu_custom_call.1} parent=1 // pred_region
      _
    $region29: #{tpu_custom_call.1} parent=1 // pred_fallthru
      _
    // Predicated region
    $region30: #{tpu_custom_call.1} parent=1 // pred_check
      _
    $region31: #{tpu_custom_call.1} parent=1 // pred_check_branch
      %82 = sbr.rel (0) target = $region33
    $region32: #{tpu_custom_call.1} parent=1 // pred_region
      %84 = dma.done [#allocation3], 128
    $region33: #{tpu_custom_call.1} parent=1 // pred_fallthru
      _
    // Predicated region
    $region34: #{tpu_custom_call.1} parent=1 // pred_check
      _
    $region35: #{tpu_custom_call.1} parent=1 // pred_check_branch
      %86 = sbr.rel (0) target = $region37
    $region36: #{tpu_custom_call.1} parent=1 // pred_region
      %88 = dma.done [#allocation6], 2048
    $region37: #{tpu_custom_call.1} parent=1 // pred_fallthru
      _
    // Predicated region
    $region38: #{tpu_custom_call.1} parent=1 // pred_check
      _
    $region39: #{tpu_custom_call.1} parent=1 // pred_check_branch
      %90 = sbr.rel (0) target = $region41
    $region40: #{tpu_custom_call.1} parent=1 // pred_region
      %92 = dma.done [#allocation6], 16
    $region41: #{tpu_custom_call.1} parent=1 // pred_fallthru
      _
    // Predicated region
    $region42: #{tpu_custom_call.1} parent=1 // pred_check
      _
    $region43: #{tpu_custom_call.1} parent=1 // pred_check_branch
      %94 = sbr.rel (0) target = $region45
    $region44: #{tpu_custom_call.1} parent=1 // pred_region
      %96 = dma.done [#allocation9], 6144
    $region45: #{tpu_custom_call.1} parent=1 // pred_fallthru
      _
    // Predicated region
    $region46: #{tpu_custom_call.1} parent=1 // pred_check
      _
    $region47: #{tpu_custom_call.1} parent=1 // pred_check_branch
      %98 = sbr.rel (0) target = $region49
    $region48: #{tpu_custom_call.1} parent=1 // pred_region
      %100 = dma.done [#allocation9], 2048
    $region49: #{tpu_custom_call.1} parent=1 // pred_fallthru
      _
    %v101 = vld [vmem:[#allocation2] sm:$0xff]
    %v102 = vld [vmem:[#allocation5] sm:$0xff]
    %v103 = vld [vmem:[#allocation5 + $0x8] sm:$0xff]
    %v104 = vld [vmem:[#allocation5 + $0x10] sm:$0xff]
    %v105 = vld [vmem:[#allocation5 + $0x18] sm:$0xff]
    %v106 = vld [vmem:[#allocation5 + $0x20] sm:$0xff]
    %v107 = vld [vmem:[#allocation5 + $0x28] sm:$0xff]
    %v108 = vld [vmem:[#allocation5 + $0x30] sm:$0xff]
    %v109 = vld [vmem:[#allocation5 + $0x38] sm:$0xff]
    %v110 = vld [vmem:[#allocation5 + $0x40] sm:$0xff]
    %v111 = vld [vmem:[#allocation5 + $0x48] sm:$0xff]
    %v112 = vld [vmem:[#allocation5 + $0x50] sm:$0xff]
    %v113 = vld [vmem:[#allocation5 + $0x58] sm:$0xff]
    %v114 = vld [vmem:[#allocation5 + $0x60] sm:$0xff]
    %v115 = vld [vmem:[#allocation5 + $0x68] sm:$0xff]
    %v116 = vld [vmem:[#allocation5 + $0x70] sm:$0xff]
    %v117 = vld [vmem:[#allocation5 + $0x78] sm:$0xff]
    %v118 = vld [vmem:[#allocation7] sm:$0x1]
    %v120 = vperm.slane %v118, 0
    %122 = vmatpush.msra.mxu0 %v117
    %123 = vmatpush.msra.mxu0 %v116
    %124 = vmatpush.msra.mxu0 %v115
    %125 = vmatpush.msra.mxu0 %v114
    %126 = vmatpush.msra.mxu0 %v113
    %127 = vmatpush.msra.mxu0 %v112
    %128 = vmatpush.msra.mxu0 %v111
    %129 = vmatpush.msra.mxu0 %v110
    %130 = vmatpush.msra.mxu0 %v109
    %131 = vmatpush.msra.mxu0 %v108
    %132 = vmatpush.msra.mxu0 %v107
    %133 = vmatpush.msra.mxu0 %v106
    %134 = vmatpush.msra.mxu0 %v105
    %135 = vmatpush.msra.mxu0 %v104
    %136 = vmatpush.msra.mxu0 %v103
    %137 = vmatpush.msra.mxu0 %v102
    %138 = vmatmul.f32.gmra.mxu0 %v101
    %v139 = vpop.f32.mrf.mxu0
    %v140 = vadd.f32 %v120, %v139
    %141 = vdwg.mxu0
    %v142 = vmax.f32 %v140, 0.0
    %v143 = vld [vmem:[#allocation8] sm:$0xff]
    %v144 = vld [vmem:[#allocation8 + $0x8] sm:$0xff]
    %v145 = vld [vmem:[#allocation8 + $0x10] sm:$0xff]
    %v146 = vld [vmem:[#allocation8 + $0x18] sm:$0xff]
    %v147 = vld [vmem:[#allocation8 + $0x20] sm:$0xff]
    %v148 = vld [vmem:[#allocation8 + $0x28] sm:$0xff]
    %v149 = vld [vmem:[#allocation8 + $0x30] sm:$0xff]
    %v150 = vld [vmem:[#allocation8 + $0x38] sm:$0xff]
    %v151 = vld [vmem:[#allocation8 + $0x40] sm:$0xff]
    %v152 = vld [vmem:[#allocation8 + $0x48] sm:$0xff]
    %v153 = vld [vmem:[#allocation8 + $0x50] sm:$0xff]
    %v154 = vld [vmem:[#allocation8 + $0x58] sm:$0xff]
    %v155 = vld [vmem:[#allocation8 + $0x60] sm:$0xff]
    %v156 = vld [vmem:[#allocation8 + $0x68] sm:$0xff]
    %v157 = vld [vmem:[#allocation8 + $0x70] sm:$0xff]
    %v158 = vld [vmem:[#allocation8 + $0x78] sm:$0xff]
    %v159 = vld [vmem:[%s4] sm:$0x1]
    %v161 = vperm.slane %v159, 0
    %163 = vmatpush.msra.mxu0 %v158
    %164 = vmatpush.msra.mxu0 %v157
    %165 = vmatpush.msra.mxu0 %v156
    %166 = vmatpush.msra.mxu0 %v155
    %167 = vmatpush.msra.mxu0 %v154
    %168 = vmatpush.msra.mxu0 %v153
    %169 = vmatpush.msra.mxu0 %v152
    %170 = vmatpush.msra.mxu0 %v151
    %171 = vmatpush.msra.mxu0 %v150
    %172 = vmatpush.msra.mxu0 %v149
    %173 = vmatpush.msra.mxu0 %v148
    %174 = vmatpush.msra.mxu0 %v147
    %175 = vmatpush.msra.mxu0 %v146
    %176 = vmatpush.msra.mxu0 %v145
    %177 = vmatpush.msra.mxu0 %v144
    %178 = vmatpush.msra.mxu0 %v143
    %179 = vmatmul.f32.gmra.mxu0 %v142
    %v180 = vpop.f32.mrf.mxu0
    %v181 = vadd.f32 %v161, %v180
    %182 = vdwg.mxu0
    %v183 = vmax.f32 %v181, 0.0
    %v184 = vadd.f32 %v183, %v142
    %s185 = scalar_lea.vmem [#allocation8], 128
    %v186 = vld [vmem:[%s185] sm:$0xff]
    %v187 = vld [vmem:[%s185 + $0x8] sm:$0xff]
    %v188 = vld [vmem:[%s185 + $0x10] sm:$0xff]
    %v189 = vld [vmem:[%s185 + $0x18] sm:$0xff]
    %v190 = vld [vmem:[%s185 + $0x20] sm:$0xff]
    %v191 = vld [vmem:[%s185 + $0x28] sm:$0xff]
    %v192 = vld [vmem:[%s185 + $0x30] sm:$0xff]
    %v193 = vld [vmem:[%s185 + $0x38] sm:$0xff]
    %v194 = vld [vmem:[%s185 + $0x40] sm:$0xff]
    %v195 = vld [vmem:[%s185 + $0x48] sm:$0xff]
    %v196 = vld [vmem:[%s185 + $0x50] sm:$0xff]
    %v197 = vld [vmem:[%s185 + $0x58] sm:$0xff]
    %v198 = vld [vmem:[%s185 + $0x60] sm:$0xff]
    %v199 = vld [vmem:[%s185 + $0x68] sm:$0xff]
    %v200 = vld [vmem:[%s185 + $0x70] sm:$0xff]
    %v201 = vld [vmem:[%s185 + $0x78] sm:$0xff]
    %s202 = scalar_lea.vmem %s4, 1
    %v203 = vld [vmem:[%s202] sm:$0x1]
    %v205 = vperm.slane %v203, 0
    %207 = vmatpush.msra.mxu0 %v201
    %208 = vmatpush.msra.mxu0 %v200
    %209 = vmatpush.msra.mxu0 %v199
    %210 = vmatpush.msra.mxu0 %v198
    %211 = vmatpush.msra.mxu0 %v197
    %212 = vmatpush.msra.mxu0 %v196
    %213 = vmatpush.msra.mxu0 %v195
    %214 = vmatpush.msra.mxu0 %v194
    %215 = vmatpush.msra.mxu0 %v193
    %216 = vmatpush.msra.mxu0 %v192
    %217 = vmatpush.msra.mxu0 %v191
    %218 = vmatpush.msra.mxu0 %v190
    %219 = vmatpush.msra.mxu0 %v189
    %220 = vmatpush.msra.mxu0 %v188
    %221 = vmatpush.msra.mxu0 %v187
    %222 = vmatpush.msra.mxu0 %v186
    %223 = vmatmul.f32.gmra.mxu0 %v184
    %v224 = vpop.f32.mrf.mxu0
    %v225 = vadd.f32 %v205, %v224
    %226 = vdwg.mxu0
    %v227 = vmax.f32 %v225, 0.0
    %v228 = vadd.f32 %v227, %v184
    %s229 = scalar_lea.vmem [#allocation8], 256
    %v230 = vld [vmem:[%s229] sm:$0xff]
    %v231 = vld [vmem:[%s229 + $0x8] sm:$0xff]
    %v232 = vld [vmem:[%s229 + $0x10] sm:$0xff]
    %v233 = vld [vmem:[%s229 + $0x18] sm:$0xff]
    %v234 = vld [vmem:[%s229 + $0x20] sm:$0xff]
    %v235 = vld [vmem:[%s229 + $0x28] sm:$0xff]
    %v236 = vld [vmem:[%s229 + $0x30] sm:$0xff]
    %v237 = vld [vmem:[%s229 + $0x38] sm:$0xff]
    %v238 = vld [vmem:[%s229 + $0x40] sm:$0xff]
    %v239 = vld [vmem:[%s229 + $0x48] sm:$0xff]
    %v240 = vld [vmem:[%s229 + $0x50] sm:$0xff]
    %v241 = vld [vmem:[%s229 + $0x58] sm:$0xff]
    %v242 = vld [vmem:[%s229 + $0x60] sm:$0xff]
    %v243 = vld [vmem:[%s229 + $0x68] sm:$0xff]
    %v244 = vld [vmem:[%s229 + $0x70] sm:$0xff]
    %v245 = vld [vmem:[%s229 + $0x78] sm:$0xff]
    %s246 = scalar_lea.vmem %s4, 2
    %v247 = vld [vmem:[%s246] sm:$0x1]
    %v249 = vperm.slane %v247, 0
    %251 = vmatpush.msra.mxu0 %v245
    %252 = vmatpush.msra.mxu0 %v244
    %253 = vmatpush.msra.mxu0 %v243
    %254 = vmatpush.msra.mxu0 %v242
    %255 = vmatpush.msra.mxu0 %v241
    %256 = vmatpush.msra.mxu0 %v240
    %257 = vmatpush.msra.mxu0 %v239
    %258 = vmatpush.msra.mxu0 %v238
    %259 = vmatpush.msra.mxu0 %v237
    %260 = vmatpush.msra.mxu0 %v236
    %261 = vmatpush.msra.mxu0 %v235
    %262 = vmatpush.msra.mxu0 %v234
    %263 = vmatpush.msra.mxu0 %v233
    %264 = vmatpush.msra.mxu0 %v232
    %265 = vmatpush.msra.mxu0 %v231
    %266 = vmatpush.msra.mxu0 %v230
    %267 = vmatmul.f32.gmra.mxu0 %v228
    %v268 = vpop.f32.mrf.mxu0
    %v269 = vadd.f32 %v249, %v268
    %270 = vdwg.mxu0
    %v271 = vmax.f32 %v269, 0.0
    %v272 = vadd.f32 %v271, %v228
    %v273 = vld [vmem:[#allocation10] sm:$0xff]
    %v274 = vld [vmem:[#allocation10 + $0x8] sm:$0xff]
    %v275 = vld [vmem:[#allocation10 + $0x10] sm:$0xff]
    %v276 = vld [vmem:[#allocation10 + $0x18] sm:$0xff]
    %v277 = vld [vmem:[#allocation10 + $0x20] sm:$0xff]
    %v278 = vld [vmem:[#allocation10 + $0x28] sm:$0xff]
    %v279 = vld [vmem:[#allocation10 + $0x30] sm:$0xff]
    %v280 = vld [vmem:[#allocation10 + $0x38] sm:$0xff]
    %v281 = vld [vmem:[#allocation10 + $0x40] sm:$0xff]
    %v282 = vld [vmem:[#allocation10 + $0x48] sm:$0xff]
    %v283 = vld [vmem:[#allocation10 + $0x50] sm:$0xff]
    %v284 = vld [vmem:[#allocation10 + $0x58] sm:$0xff]
    %v285 = vld [vmem:[#allocation10 + $0x60] sm:$0xff]
    %v286 = vld [vmem:[#allocation10 + $0x68] sm:$0xff]
    %v287 = vld [vmem:[#allocation10 + $0x70] sm:$0xff]
    %v288 = vld [vmem:[#allocation10 + $0x78] sm:$0xff]
    %v289 = vld [vmem:[%s6] sm:$0x1]
    %v291 = vperm.slane %v289, 0
    %293 = vmatpush.msra.mxu0 %v288
    %294 = vmatpush.msra.mxu0 %v287
    %295 = vmatpush.msra.mxu0 %v286
    %296 = vmatpush.msra.mxu0 %v285
    %297 = vmatpush.msra.mxu0 %v284
    %298 = vmatpush.msra.mxu0 %v283
    %299 = vmatpush.msra.mxu0 %v282
    %300 = vmatpush.msra.mxu0 %v281
    %301 = vmatpush.msra.mxu0 %v280
    %302 = vmatpush.msra.mxu0 %v279
    %303 = vmatpush.msra.mxu0 %v278
    %304 = vmatpush.msra.mxu0 %v277
    %305 = vmatpush.msra.mxu0 %v276
    %306 = vmatpush.msra.mxu0 %v275
    %307 = vmatpush.msra.mxu0 %v274
    %308 = vmatpush.msra.mxu0 %v273
    %309 = vmatmul.f32.gmra.mxu0 %v272
    %v310 = vpop.f32.mrf.mxu0
    %v311 = vadd.f32 %v291, %v310
    %312 = vdwg.mxu0
    %313 = vst [vmem:[#allocation11] sm:$0xff] %v311
    // Predicated region
    $region50: #{tpu_custom_call.1} parent=1 // pred_check
      _
    $region51: #{tpu_custom_call.1} parent=1 // pred_check_branch
      %315 = sbr.rel (0) target = $region53
    $region52: #{tpu_custom_call.1} parent=1 // pred_region
      %317 = vsyncadd [#allocation4], 0
      %s319 = sshll.u32 [#allocation11], 4
      %s320 = int_to_ptr.vmem [resolvable:$true] %s319
      %s321 = sshll.u32 %s7, 4
      %s322 = int_to_ptr.hbm [resolvable:$true] %s321
      %324 = dma.vmem_to_hbm [thread:$0]  %s320, 128, %s322, [#allocation4]
    $region53: #{tpu_custom_call.1} parent=1 // pred_fallthru
      _
    // Predicated region
    $region54: #{tpu_custom_call.1} parent=1 // pred_check
      _
    $region55: #{tpu_custom_call.1} parent=1 // pred_check_branch
      %326 = sbr.rel (0) target = $region57
    $region56: #{tpu_custom_call.1} parent=1 // pred_region
      %328 = dma.done [#allocation4], 128
    $region57: #{tpu_custom_call.1} parent=1 // pred_fallthru
      _
    %329 = vsyncpa [#allocation3], 1
    %330 = vsyncpa [#allocation6], 1
    %331 = vsyncpa [#allocation9], 1
    %332 = vsyncpa [#allocation4], 1

</llo_original>
